<compile_context>
chip_gen: v5e
topology: v5e:2x2
jax: 0.10.0
libtpu: 0.0.40
codegen_flags: <defaults>
</compile_context>

<pallas_src>
import functools

import jax
import jax.numpy as jnp
from jax.experimental import pallas as pl
from jax.experimental.pallas import tpu as pltpu


def _focal_tversky_kernel(logits_ref, labels_ref, out_ref, acc_tp, acc_cnt,
                          *, ignore_index, hw, tn):
    # logits_ref: (C, TN) block, classes on sublanes, pixels on lanes
    # labels_ref: (1, TN) integer (native dtype, upcast here)
    # out_ref   : (2, 128) f32 VMEM block for image n -> [TP_n, count_n]
    #             (broadcast across lanes), written on image's last step only
    # acc_tp/acc_cnt: (1, TN) f32 VMEM vector accumulators, per-image resident
    j = pl.program_id(1)

    @pl.when(j == 0)
    def _init():
        # re-initialized for EVERY image (required for per-image partials /
        # megacore sharding of the N axis)
        acc_tp[...] = jnp.zeros_like(acc_tp)
        acc_cnt[...] = jnp.zeros_like(acc_cnt)

    x = logits_ref[...].astype(jnp.float32)                      # (C, TN)
    labels = labels_ref[...].astype(jnp.int32)                   # (1, TN)

    # column validity: inside the real H*W extent (ragged last tile reads
    # unspecified data -- masked out here) and not the ignore_index label.
    col = j * tn + jax.lax.broadcasted_iota(jnp.int32, (1, tn), 1)
    keep = jnp.logical_and(labels != ignore_index, col < hw)     # (1, TN) bool

    # numerically stable softmax along the class (sublane) axis, but only the
    # true-class probability is needed: p_true = exp(x_true - m) / sum exp(x - m)
    m = jnp.max(x, axis=0, keepdims=True)                        # (1, TN)
    e = jnp.exp(x - m)                                           # (C, TN)
    s = jnp.sum(e, axis=0, keepdims=True)                        # (1, TN)
    cls = jax.lax.broadcasted_iota(jnp.int32, x.shape, 0)        # (C, TN)
    e_true = jnp.sum(jnp.where(cls == labels, e, 0.0),
                     axis=0, keepdims=True)                      # (1, TN)

    # EUP approx reciprocal + one Newton-Raphson refinement on the VPU:
    # rel. error ~2^-24, avoids the full-precision divide path.
    r = pl.reciprocal(s, approx=True)
    r = r * (2.0 - s * r)
    p_true = e_true * r                                          # (1, TN)

    # select (not multiply) so garbage/NaN in masked columns cannot leak in.
    acc_tp[...] += jnp.where(keep, p_true, 0.0)
    acc_cnt[...] += keep.astype(jnp.float32)

    @pl.when(j == pl.num_programs(1) - 1)
    def _finalize():
        tp = jnp.sum(acc_tp[...])
        cnt = jnp.sum(acc_cnt[...])
        out_ref[0:1, :] = jnp.full((1, 128), tp, dtype=jnp.float32)
        out_ref[1:2, :] = jnp.full((1, 128), cnt, dtype=jnp.float32)


def focal_tversky_loss(output_nchw, target_nhw, *, smooth=1.0, ignore_index=255,
                       alpha=0.7, gamma=0.75, tile_cols=32768):
    # Precondition (same as the PyTorch module after masking): every label that
    # is not ignore_index lies in [0, C).
    assert tile_cols % 128 == 0
    N, C, H, W = output_nchw.shape
    HW = H * W

    # Free reshapes only -- no transpose / pad / cast copies in the wrapper.
    # Labels keep their native integer dtype (int8/int16/int32 all fine); the
    # upcast happens per-tile inside the kernel, not as a whole-array HBM pass.
    x = output_nchw.reshape(N, C, HW)
    lab = target_nhw.reshape(N, 1, HW)

    # Tile the pixel axis.  Use the full extent when it fits (always legal);
    # otherwise a lane-aligned 32K tile with the ragged tail masked in-kernel.
    tn = HW if HW <= tile_cols else tile_cols
    num_tiles = pl.cdiv(HW, tn)

    kernel = functools.partial(_focal_tversky_kernel,
                               ignore_index=ignore_index, hw=HW, tn=tn)

    # Padded-layout VMEM footprint: double-buffered input blocks (C pads to 8
    # sublanes, labels pad to 8 sublanes) + resident accumulators + tiny output.
    pad8 = lambda s: -(-s // 8) * 8
    lab_isz = jnp.dtype(lab.dtype).itemsize
    vmem_bytes = (2 * (pad8(C) * tn * 4 + pad8(1) * tn * lab_isz)   # inputs, x2 buf
                  + 2 * pad8(1) * tn * 4                            # accumulators
                  + 2 * 2 * 128 * 4)                                # output blocks
    vmem_limit = max(int(vmem_bytes) + (4 << 20), 16 << 20)

    partials = pl.pallas_call(
        kernel,
        out_shape=jax.ShapeDtypeStruct((N, 2, 128), jnp.float32),
        grid=(N, num_tiles),
        in_specs=[
            pl.BlockSpec((None, C, tn), lambda n, j: (n, 0, j)),
            pl.BlockSpec((None, 1, tn), lambda n, j: (n, 0, j)),
        ],
        out_specs=pl.BlockSpec((None, 2, 128), lambda n, j: (n, 0, 0)),
        scratch_shapes=[
            pltpu.VMEM((1, tn), jnp.float32),   # TP partials per lane
            pltpu.VMEM((1, tn), jnp.float32),   # kept-pixel count partials
        ],
        compiler_params=pltpu.CompilerParams(
            dimension_semantics=("parallel", "arbitrary"),
            vmem_limit_bytes=vmem_limit),
    )(x, lab)

    # Tiny (N,2) -> scalar reduction in JAX.
    TP = jnp.sum(partials[:, 0, 0])
    count_keep = jnp.sum(partials[:, 1, 0])
    # With one-hot targets and softmax rows summing to 1: FP = FN = count - TP.
    FP = count_keep - TP
    FN = count_keep - TP
    tversky = (TP + smooth) / (TP + alpha * FN + (1.0 - alpha) * FP + smooth)
    return (1.0 - tversky) ** gamma


def _reference_loss(output, target, smooth=1.0, ignore_index=255,
                    alpha=0.7, gamma=0.75):
    # pure-JAX reference mirroring the PyTorch forward
    N, C, H, W = output.shape
    keep = (target != ignore_index)[:, None, :, :]                 # (N,1,H,W)
    one_hot = (jax.nn.one_hot(target, C, dtype=jnp.float32)
               .transpose(0, 3, 1, 2)) * keep                      # (N,C,H,W)
    probs = jax.nn.softmax(output.astype(jnp.float32), axis=1) * keep
    o = probs.reshape(-1)
    t = one_hot.reshape(-1)
    TP = jnp.sum(o * t)
    FP = jnp.sum((1 - t) * o)
    FN = jnp.sum(t * (1 - o))
    tversky = (TP + smooth) / (TP + alpha * FN + (1 - alpha) * FP + smooth)
    return (1.0 - tversky) ** gamma


if __name__ == "__main__":
    key = jax.random.PRNGKey(0)
    k1, k2, k3 = jax.random.split(key, 3)

    N, C, H, W = 2, 4, 16, 16
    logits = jax.random.normal(k1, (N, C, H, W), dtype=jnp.float32)
    target = jax.random.randint(k2, (N, H, W), 0, C, dtype=jnp.int32)
    # sprinkle some ignore_index pixels to exercise masking
    ignore_mask = jax.random.uniform(k3, (N, H, W)) < 0.1
    target = jnp.where(ignore_mask, 255, target)

    loss = focal_tversky_loss(logits, target)
    loss = jax.block_until_ready(loss)

    ref = _reference_loss(logits, target)
    assert jnp.allclose(loss, ref, atol=1e-5, rtol=1e-5), (loss, ref)

    print("KERNEL_OK")
</pallas_src>

<mosaic_0001>
module attributes {stable_mosaic.version = 11 : i64} {
  func.func @_focal_tversky_kernel(%arg0: i32, %arg1: i32, %arg2: memref<1x4x256xf32, #tpu.memory_space<vmem>>, %arg3: memref<1x1x256xi32, #tpu.memory_space<vmem>>, %arg4: memref<1x2x128xf32, #tpu.memory_space<vmem>>, %arg5: memref<1x256xf32, #tpu.memory_space<vmem>>, %arg6: memref<1x256xf32, #tpu.memory_space<vmem>>) attributes {dimension_semantics = [#tpu.dimension_semantics<parallel>, #tpu.dimension_semantics<arbitrary>], iteration_bounds = array<i64: 2, 1>, scalar_prefetch = 0 : i64, scratch_operands = 2 : i64, tpu.core_type = #tpu.core_type<tc>, window_params = [{transform_indices = @transform_0, window_bounds = array<i64: 1, 4, 256>}, {transform_indices = @transform_1, window_bounds = array<i64: 1, 1, 256>}, {transform_indices = @transform_2, window_bounds = array<i64: 1, 2, 128>}]} {
    %c0_i32 = arith.constant 0 : i32
    %0 = arith.cmpi eq, %arg1, %c0_i32 : i32
    %1 = arith.extui %0 : i1 to i32
    %c0_i32_0 = arith.constant 0 : i32
    %2 = arith.cmpi ne, %1, %c0_i32_0 : i32
    scf.if %2 {
      %cst_22 = arith.constant 0.000000e+00 : f32
      %49 = vector.broadcast %cst_22 : f32 to vector<1x256xf32>
      %c0_23 = arith.constant 0 : index
      %c0_24 = arith.constant 0 : index
      %50 = vector.load %arg5[%c0_23, %c0_24] : memref<1x256xf32, #tpu.memory_space<vmem>>, vector<1x256xf32>
      tpu.vector_store %arg5[%c0_23, %c0_24], %49 {strides = array<i32>} : memref<1x256xf32, #tpu.memory_space<vmem>>, vector<1x256xf32>,
      %cst_25 = arith.constant 0.000000e+00 : f32
      %51 = vector.broadcast %cst_25 : f32 to vector<1x256xf32>
      %c0_26 = arith.constant 0 : index
      %c0_27 = arith.constant 0 : index
      %52 = vector.load %arg6[%c0_26, %c0_27] : memref<1x256xf32, #tpu.memory_space<vmem>>, vector<1x256xf32>
      tpu.vector_store %arg6[%c0_26, %c0_27], %51 {strides = array<i32>} : memref<1x256xf32, #tpu.memory_space<vmem>>, vector<1x256xf32>,
    } else {
    }
    %c0 = arith.constant 0 : index
    %c0_1 = arith.constant 0 : index
    %c0_2 = arith.constant 0 : index
    %3 = vector.load %arg2[%c0, %c0_1, %c0_2] : memref<1x4x256xf32, #tpu.memory_space<vmem>>, vector<1x4x256xf32>
    %4 = vector.shape_cast %3 : vector<1x4x256xf32> to vector<4x256xf32>
    %c0_3 = arith.constant 0 : index
    %c0_4 = arith.constant 0 : index
    %c0_5 = arith.constant 0 : index
    %5 = vector.load %arg3[%c0_3, %c0_4, %c0_5] : memref<1x1x256xi32, #tpu.memory_space<vmem>>, vector<1x1x256xi32>
    %6 = vector.shape_cast %5 : vector<1x1x256xi32> to vector<1x256xi32>
    %c256_i32 = arith.constant 256 : i32
    %7 = arith.muli %arg1, %c256_i32 : i32
    %8 = tpu.iota {dimensions = array<i32: 1>} : vector<1x256xi32>
    %9 = vector.broadcast %7 : i32 to vector<1x256xi32>
    %10 = arith.addi %9, %8 : vector<1x256xi32>
    %c255_i32 = arith.constant 255 : i32
    %11 = vector.broadcast %c255_i32 : i32 to vector<1x256xi32>
    %12 = arith.cmpi ne, %6, %11 : vector<1x256xi32>
    %c256_i32_6 = arith.constant 256 : i32
    %13 = vector.broadcast %c256_i32_6 : i32 to vector<1x256xi32>
    %14 = arith.cmpi slt, %10, %13 : vector<1x256xi32>
    %15 = arith.andi %12, %14 : vector<1x256xi1>
    %cst = arith.constant dense<0xFF800000> : vector<256xf32>
    %16 = vector.multi_reduction <maximumf>, %4, %cst [0] : vector<4x256xf32> to vector<256xf32>
    %17 = vector.shape_cast %16 : vector<256xf32> to vector<1x256xf32>
    %18 = vector.broadcast %17 : vector<1x256xf32> to vector<4x256xf32>
    %19 = arith.subf %4, %18 : vector<4x256xf32>
    %20 = math.exp %19 : vector<4x256xf32>
    %cst_7 = arith.constant dense<0.000000e+00> : vector<256xf32>
    %21 = vector.multi_reduction <add>, %20, %cst_7 [0] : vector<4x256xf32> to vector<256xf32>
    %22 = vector.shape_cast %21 : vector<256xf32> to vector<1x256xf32>
    %23 = tpu.iota {dimensions = array<i32: 0>} : vector<4x256xi32>
    %24 = vector.broadcast %6 : vector<1x256xi32> to vector<4x256xi32>
    %25 = arith.cmpi eq, %23, %24 : vector<4x256xi32>
    %cst_8 = arith.constant 0.000000e+00 : f32
    %26 = vector.broadcast %cst_8 : f32 to vector<4x256xf32>
    %27 = arith.select %25, %20, %26 : vector<4x256xi1>, vector<4x256xf32>
    %cst_9 = arith.constant dense<0.000000e+00> : vector<256xf32>
    %28 = vector.multi_reduction <add>, %27, %cst_9 [0] : vector<4x256xf32> to vector<256xf32>
    %29 = vector.shape_cast %28 : vector<256xf32> to vector<1x256xf32>
    %30 = tpu.reciprocal %22 {approx = true} : vector<1x256xf32> -> vector<1x256xf32>
    %31 = arith.mulf %22, %30 : vector<1x256xf32>
    %cst_10 = arith.constant 2.000000e+00 : f32
    %32 = vector.broadcast %cst_10 : f32 to vector<1x256xf32>
    %33 = arith.subf %32, %31 : vector<1x256xf32>
    %34 = arith.mulf %30, %33 : vector<1x256xf32>
    %35 = arith.mulf %29, %34 : vector<1x256xf32>
    %c0_11 = arith.constant 0 : index
    %c0_12 = arith.constant 0 : index
    %36 = vector.load %arg5[%c0_11, %c0_12] : memref<1x256xf32, #tpu.memory_space<vmem>>, vector<1x256xf32>
    %cst_13 = arith.constant 0.000000e+00 : f32
    %37 = vector.broadcast %cst_13 : f32 to vector<1x256xf32>
    %38 = arith.select %15, %35, %37 : vector<1x256xi1>, vector<1x256xf32>
    %39 = arith.addf %36, %38 : vector<1x256xf32>
    %c0_14 = arith.constant 0 : index
    %c0_15 = arith.constant 0 : index
    %40 = vector.load %arg5[%c0_14, %c0_15] : memref<1x256xf32, #tpu.memory_space<vmem>>, vector<1x256xf32>
    tpu.vector_store %arg5[%c0_14, %c0_15], %39 {strides = array<i32>} : memref<1x256xf32, #tpu.memory_space<vmem>>, vector<1x256xf32>,
    %c0_16 = arith.constant 0 : index
    %c0_17 = arith.constant 0 : index
    %41 = vector.load %arg6[%c0_16, %c0_17] : memref<1x256xf32, #tpu.memory_space<vmem>>, vector<1x256xf32>
    %42 = arith.extui %15 : vector<1x256xi1> to vector<1x256xi32>
    %43 = arith.sitofp %42 : vector<1x256xi32> to vector<1x256xf32>
    %44 = arith.addf %41, %43 : vector<1x256xf32>
    %c0_18 = arith.constant 0 : index
    %c0_19 = arith.constant 0 : index
    %45 = vector.load %arg6[%c0_18, %c0_19] : memref<1x256xf32, #tpu.memory_space<vmem>>, vector<1x256xf32>
    tpu.vector_store %arg6[%c0_18, %c0_19], %44 {strides = array<i32>} : memref<1x256xf32, #tpu.memory_space<vmem>>, vector<1x256xf32>,
    %c0_i32_20 = arith.constant 0 : i32
    %46 = arith.cmpi eq, %arg1, %c0_i32_20 : i32
    %47 = arith.extui %46 : i1 to i32
    %c0_i32_21 = arith.constant 0 : i32
    %48 = arith.cmpi ne, %47, %c0_i32_21 : i32
    scf.if %48 {
      %c0_22 = arith.constant 0 : index
      %c0_23 = arith.constant 0 : index
      %49 = vector.load %arg5[%c0_22, %c0_23] : memref<1x256xf32, #tpu.memory_space<vmem>>, vector<1x256xf32>
      %50 = vector.shape_cast %49 : vector<1x256xf32> to vector<1x1x256xf32>
      %cst_24 = arith.constant dense<0.000000e+00> : vector<1xf32>
      %51 = vector.multi_reduction <add>, %50, %cst_24 [1, 2] : vector<1x1x256xf32> to vector<1xf32>
      %52 = vector.shape_cast %51 : vector<1xf32> to vector<1x1x1xf32>
      %53 = vector.extract %52[0, 0, 0] : f32 from vector<1x1x1xf32>
      %c0_25 = arith.constant 0 : index
      %c0_26 = arith.constant 0 : index
      %54 = vector.load %arg6[%c0_25, %c0_26] : memref<1x256xf32, #tpu.memory_space<vmem>>, vector<1x256xf32>
      %55 = vector.shape_cast %54 : vector<1x256xf32> to vector<1x1x256xf32>
      %cst_27 = arith.constant dense<0.000000e+00> : vector<1xf32>
      %56 = vector.multi_reduction <add>, %55, %cst_27 [1, 2] : vector<1x1x256xf32> to vector<1xf32>
      %57 = vector.shape_cast %56 : vector<1xf32> to vector<1x1x1xf32>
      %58 = vector.extract %57[0, 0, 0] : f32 from vector<1x1x1xf32>
      %59 = vector.broadcast %53 : f32 to vector<1x128xf32>
      %c0_28 = arith.constant 0 : index
      %c0_29 = arith.constant 0 : index
      %c0_30 = arith.constant 0 : index
      %60 = vector.load %arg4[%c0_28, %c0_29, %c0_30] : memref<1x2x128xf32, #tpu.memory_space<vmem>>, vector<1x1x128xf32>
      %61 = vector.shape_cast %60 : vector<1x1x128xf32> to vector<1x128xf32>
      %62 = vector.shape_cast %59 : vector<1x128xf32> to vector<1x1x128xf32>
      tpu.vector_store %arg4[%c0_28, %c0_29, %c0_30], %62 {strides = array<i32>} : memref<1x2x128xf32, #tpu.memory_space<vmem>>, vector<1x1x128xf32>,
      %63 = vector.broadcast %58 : f32 to vector<1x128xf32>
      %c0_31 = arith.constant 0 : index
      %c1 = arith.constant 1 : index
      %c0_32 = arith.constant 0 : index
      %64 = vector.load %arg4[%c0_31, %c1, %c0_32] : memref<1x2x128xf32, #tpu.memory_space<vmem>>, vector<1x1x128xf32>
      %65 = vector.shape_cast %64 : vector<1x1x128xf32> to vector<1x128xf32>
      %66 = vector.shape_cast %63 : vector<1x128xf32> to vector<1x1x128xf32>
      tpu.vector_store %arg4[%c0_31, %c1, %c0_32], %66 {strides = array<i32>} : memref<1x2x128xf32, #tpu.memory_space<vmem>>, vector<1x1x128xf32>,
    } else {
    }
    return
  }
  func.func @transform_0(%arg0: i32, %arg1: i32) -> (i32, i32, i32) {
    %c0_i32 = arith.constant 0 : i32
    %c0_i32_0 = arith.constant 0 : i32
    return %arg0, %c0_i32, %arg1 : i32, i32, i32
  }
  func.func @transform_1(%arg0: i32, %arg1: i32) -> (i32, i32, i32) {
    %c0_i32 = arith.constant 0 : i32
    %c0_i32_0 = arith.constant 0 : i32
    return %arg0, %c0_i32, %arg1 : i32, i32, i32
  }
  func.func @transform_2(%arg0: i32, %arg1: i32) -> (i32, i32, i32) {
    %c0_i32 = arith.constant 0 : i32
    %c0_i32_0 = arith.constant 0 : i32
    %c0_i32_1 = arith.constant 0 : i32
    return %arg0, %c0_i32, %c0_i32_0 : i32, i32, i32
  }
}

</mosaic_0001>

<llo_original>
// kernel: tpu_custom_call.1
$region0: #{tpu_custom_call.1}
  #allocation0 [shape = 'u32[]', space=smem, size = 0x4, offset = 0x4, fixed_abs, tag = 'smem constant byte address 0x4 - core index']
  #allocation1 [shape = 'u32[72,128]{1,0:T(1,128)}', space=vmem, size = 0x9000, scoped, tag = 'internal scratch']
  #allocation2 [shape = 'f32[1,256]{1,0:T(1,128)}', space=vmem, size = 0x400, scoped, tag = 'scratch operand']
  #allocation3 [shape = 'f32[1,256]{1,0:T(1,128)}', space=vmem, size = 0x400, scoped, tag = 'scratch operand']
  %s0 = inlined_call_operand.hbm [shape: f32[2,4,256], index: 0, kind: input, shape index: {}]
  %s1 = inlined_call_operand.hbm [shape: s32[2,1,256], index: 1, kind: input, shape index: {}]
  %s2 = inlined_call_operand.hbm [shape: f32[2,2,128], index: 2, kind: output, shape index: {}]
  %s3 = sld [smem:[#allocation0]]
  $region57: #{tpu_custom_call.1} parent=0
    _
  %s5 = ssub.s32 1, %s3
  %s6 = scalar_select 0, %s5, %s3
  $region1: #{tpu_custom_call.1} parent=0
    #allocation4 [shape = 'u8[8192]{0}', space=vmem, size = 0x2000, scoped, tag = 'input window, operand 0']
    #allocation5 [shape = 's32[2]{0}', space=sflag, size = 0x8, scoped, tag = 'scoped memory for tpu_custom_call.1']
    #allocation6 [shape = 's32[2]{0}', space=sflag, size = 0x8, scoped, tag = 'scoped memory for tpu_custom_call.1']
    #allocation7 [shape = 'u8[2048]{0}', space=vmem, size = 0x800, scoped, tag = 'input window, operand 1']
    #allocation8 [shape = 's32[2]{0}', space=sflag, size = 0x8, scoped, tag = 'scoped memory for tpu_custom_call.1']
    #allocation9 [shape = 'u8[2048]{0}', space=vmem, size = 0x800, scoped, tag = 'output window, operand 0']
    %7 = vsyncpa [#allocation5], 0
    %s8 = scalar_lea.sflag [#allocation5], 1
    %9 = vsyncpa %s8, 0
    %10 = vsyncpa [#allocation8], 0
    %s11 = scalar_lea.sflag [#allocation8], 1
    %12 = vsyncpa %s11, 0
    %13 = vsyncpa [#allocation6], 0
    %s14 = scalar_lea.sflag [#allocation6], 1
    %15 = vsyncpa %s14, 0
    loop: start=0, step=1, limit=4
    $region2: #{tpu_custom_call.1} parent=1 // loop_pre_header
      _
    $region3: #{tpu_custom_call.1} parent=1 // loop_header
      %s17 = sphi 0, %s21
      %p18 = scmp.ge.s32.totalorder %s17, 4
      %s24 = sphi 0, %s36
      %s25 = sphi 0, %s32
      %s26 = sphi 0, %s24
      %s27 = sphi 0, %s25
      %s28 = sphi 0, %s26
      %s29 = sphi 0, %s27
      %s41 = sphi 0, %s43
      %s44 = sphi 0, %s41
      %s45 = sphi 0, %s44
      %s61 = sphi 0, %s45
      %s69 = sphi 0, %s71
      %s72 = sphi 0, %s69
      %s73 = sphi 0, %s72
      %s89 = sphi 0, %s73
      %s95 = sphi 0, %s97
      %s98 = sphi 0, %s95
      %s99 = sphi 0, %s98
      %s115 = sphi 0, %s99
    $region4: #{tpu_custom_call.1} parent=1 // loop_header_branch
      %20 = sbr.rel (%p18) target = $region8
    $region5: #{tpu_custom_call.1} parent=1 // loop_body
      %s22 = ssub.s32 %s17, 1
      %s23 = ssub.s32 %s17, 2
      %s30 = sadd.s32 1, %s25
      %p31 = scmp.ge.s32.totalorder %s30, 1
      %s32 = scalar_select %p31, 0, %s30
      %s33 = sadd.s32 1, %s24
      %s34 = scalar_select %p31, %s33, %s24
      %p35 = scmp.ge.s32.totalorder %s34, 2
      %s36 = scalar_select %p35, 0, %s34
      %s37 = ssub.s32 %s24, %s36
      %s38 = ssub.s32 %s25, %s32
      %s39 = sor.u32 %s37, %s38
      %p40 = scmp.eq.s32.totalorder %s39, 0
      %s42 = sadd.s32 %s41, 1
      %s43 = scalar_select %p40, %s41, %s42
      %p46 = pneg %p40
      %p47 = scmp.eq.s32.totalorder %s17, 1
      %p48 = por %p46, %p47
      %p49 = scmp.ne.s32.totalorder %s41, %s44
      %p50 = scmp.eq.s32.totalorder %s17, 0
      %p51 = por %p49, %p50
      %p52 = scmp.ne.s32.totalorder %s41, %s44
      %p53 = scmp.eq.s32.totalorder %s22, 1
      %p54 = por %p52, %p53
      %p55 = scmp.ne.s32.totalorder %s44, %s45
      %p56 = scmp.eq.s32.totalorder %s22, 0
      %p57 = por %p55, %p56
      %p58 = scmp.ne.s32.totalorder %s44, %s45
      %p59 = scmp.eq.s32.totalorder %s23, 1
      %p60 = por %p58, %p59
      %p62 = scmp.ne.s32.totalorder %s45, %s61
      %p63 = scmp.eq.s32.totalorder %s23, 0
      %p64 = por %p62, %p63
      %s65 = ssub.s32 %s24, %s36
      %s66 = ssub.s32 %s25, %s32
      %s67 = sor.u32 %s65, %s66
      %p68 = scmp.eq.s32.totalorder %s67, 0
      %s70 = sadd.s32 %s69, 1
      %s71 = scalar_select %p68, %s69, %s70
      %p74 = pneg %p68
      %p75 = scmp.eq.s32.totalorder %s17, 1
      %p76 = por %p74, %p75
      %p77 = scmp.ne.s32.totalorder %s69, %s72
      %p78 = scmp.eq.s32.totalorder %s17, 0
      %p79 = por %p77, %p78
      %p80 = scmp.ne.s32.totalorder %s69, %s72
      %p81 = scmp.eq.s32.totalorder %s22, 1
      %p82 = por %p80, %p81
      %p83 = scmp.ne.s32.totalorder %s72, %s73
      %p84 = scmp.eq.s32.totalorder %s22, 0
      %p85 = por %p83, %p84
      %p86 = scmp.ne.s32.totalorder %s72, %s73
      %p87 = scmp.eq.s32.totalorder %s23, 1
      %p88 = por %p86, %p87
      %p90 = scmp.ne.s32.totalorder %s73, %s89
      %p91 = scmp.eq.s32.totalorder %s23, 0
      %p92 = por %p90, %p91
      %s93 = ssub.s32 %s24, %s36
      %p94 = scmp.eq.s32.totalorder %s93, 0
      %s96 = sadd.s32 %s95, 1
      %s97 = scalar_select %p94, %s95, %s96
      %p100 = pneg %p94
      %p101 = scmp.eq.s32.totalorder %s17, 1
      %p102 = por %p100, %p101
      %p103 = scmp.ne.s32.totalorder %s95, %s98
      %p104 = scmp.eq.s32.totalorder %s17, 0
      %p105 = por %p103, %p104
      %p106 = scmp.ne.s32.totalorder %s95, %s98
      %p107 = scmp.eq.s32.totalorder %s22, 1
      %p108 = por %p106, %p107
      %p109 = scmp.ne.s32.totalorder %s98, %s99
      %p110 = scmp.eq.s32.totalorder %s22, 0
      %p111 = por %p109, %p110
      %p112 = scmp.ne.s32.totalorder %s98, %s99
      %p113 = scmp.eq.s32.totalorder %s23, 1
      %p114 = por %p112, %p113
      %p116 = scmp.ne.s32.totalorder %s99, %s115
      %p117 = scmp.eq.s32.totalorder %s23, 0
      %p118 = por %p116, %p117
      %p119 = scmp.le.s32.totalorder 1, %s17
      %p120 = scmp.lt.s32.totalorder %s17, 3
      %p121 = pnand %p119, %p120
      %p122 = pneg %p121
      // Predicated region
      $region9: #{tpu_custom_call.1} parent=5 // pred_check
        _
      $region10: #{tpu_custom_call.1} parent=5 // pred_check_branch
        %124 = sbr.rel (%p121) target = $region12
      $region11: #{tpu_custom_call.1} parent=5 // pred_region
        %s125 = ssub.s32 %s17, 1
      $region12: #{tpu_custom_call.1} parent=5 // pred_fallthru
        _
      %p126 = scmp.lt.s32.totalorder %s17, 2
      // Predicated region
      $region13: #{tpu_custom_call.1} parent=5 // pred_check
        %p127 = pneg %p126
      $region14: #{tpu_custom_call.1} parent=5 // pred_check_branch
        %129 = sbr.rel (%p127) target = $region16
      $region15: #{tpu_custom_call.1} parent=5 // pred_region
        // Predicated region
        $region17: #{tpu_custom_call.1} parent=15 // pred_check
          %p130 = pneg %p51
        $region18: #{tpu_custom_call.1} parent=15 // pred_check_branch
          %132 = sbr.rel (%p130) target = $region20
        $region19: #{tpu_custom_call.1} parent=15 // pred_region
          %s133 = sand.u32 %s41, 1
          %s134 = scalar_lea.sflag [#allocation5], %s133
          %s135 = sand.u32 %s41, 1
          %s136 = smul.addr %s135, 8
          %s137 = scalar_lea.vmem [#allocation4], %s136
          %s138 = smul.u32 2, %s25
          %140 = vsyncadd %s134, 0
          %s141 = smul.addr %s24, 2
          %s142 = sadd.s32 %s138, %s141
          %s143 = smul.addr %s142, 4
          %s144 = scalar_lea.hbm %s0, %s143
          %s146 = sshll.u32 %s144, 4
          %s147 = int_to_ptr.hbm [resolvable:$true] %s146
          %s148 = sshll.u32 %s137, 4
          %s149 = int_to_ptr.vmem [resolvable:$true] %s148
          %151 = dma.hbm_to_vmem [thread:$0]  %s147, 128, %s149, %s134
        $region20: #{tpu_custom_call.1} parent=15 // pred_fallthru
          _
        // Predicated region
        $region21: #{tpu_custom_call.1} parent=15 // pred_check
          %p152 = pneg %p79
        $region22: #{tpu_custom_call.1} parent=15 // pred_check_branch
          %154 = sbr.rel (%p152) target = $region24
        $region23: #{tpu_custom_call.1} parent=15 // pred_region
          %s155 = sand.u32 %s69, 1
          %s156 = scalar_lea.sflag [#allocation8], %s155
          %s157 = sand.u32 %s69, 1
          %s158 = smul.addr %s157, 2
          %s159 = scalar_lea.vmem [#allocation7], %s158
          %s160 = smul.u32 2, %s25
          %162 = vsyncadd %s156, 0
          %s163 = smul.addr %s24, 2
          %s164 = sadd.s32 %s160, %s163
          %s165 = scalar_lea.hbm %s1, %s164
          %s167 = sshll.u32 %s165, 4
          %s168 = int_to_ptr.hbm [resolvable:$true] %s167
          %s169 = sshll.u32 %s159, 4
          %s170 = int_to_ptr.vmem [resolvable:$true] %s169
          %172 = dma.hbm_to_vmem [thread:$0]  %s168, 32, %s170, %s156
        $region24: #{tpu_custom_call.1} parent=15 // pred_fallthru
          _
      $region16: #{tpu_custom_call.1} parent=5 // pred_fallthru
        _
      %p173 = scmp.le.s32.totalorder 1, %s17
      %p174 = scmp.lt.s32.totalorder %s17, 3
      %p175 = pnand %p173, %p174
      %p176 = pneg %p175
      // Predicated region
      $region25: #{tpu_custom_call.1} parent=5 // pred_check
        _
      $region26: #{tpu_custom_call.1} parent=5 // pred_check_branch
        %178 = sbr.rel (%p175) target = $region28
      $region27: #{tpu_custom_call.1} parent=5 // pred_region
        %s179 = ssub.s32 %s17, 1
        %s180 = sand.u32 %s44, 1
        %s181 = scalar_lea.sflag [#allocation5], %s180
        %s182 = sand.u32 %s44, 1
        %s183 = smul.addr %s182, 8
        %s184 = scalar_lea.vmem [#allocation4], %s183
        // Predicated region
        $region29: #{tpu_custom_call.1} parent=27 // pred_check
          %p185 = pneg %p57
        $region30: #{tpu_custom_call.1} parent=27 // pred_check_branch
          %187 = sbr.rel (%p185) target = $region32
        $region31: #{tpu_custom_call.1} parent=27 // pred_region
          %189 = dma.done %s181, 128
        $region32: #{tpu_custom_call.1} parent=27 // pred_fallthru
          _
        %s190 = sand.u32 %s72, 1
        %s191 = scalar_lea.sflag [#allocation8], %s190
        %s192 = sand.u32 %s72, 1
        %s193 = smul.addr %s192, 2
        %s194 = scalar_lea.vmem [#allocation7], %s193
        // Predicated region
        $region33: #{tpu_custom_call.1} parent=27 // pred_check
          %p195 = pneg %p85
        $region34: #{tpu_custom_call.1} parent=27 // pred_check_branch
          %197 = sbr.rel (%p195) target = $region36
        $region35: #{tpu_custom_call.1} parent=27 // pred_region
          %199 = dma.done %s191, 32
        $region36: #{tpu_custom_call.1} parent=27 // pred_fallthru
          _
        %s200 = sand.u32 %s44, 1
        %s201 = scalar_lea.sflag [#allocation5], %s200
        %s202 = sand.u32 %s44, 1
        %s203 = smul.addr %s202, 8
        %s204 = scalar_lea.vmem [#allocation4], %s203
        %p205 = pneg %p57
        %p206 = pneg %p54
        %s207 = sand.u32 %s72, 1
        %s208 = scalar_lea.sflag [#allocation8], %s207
        %s209 = sand.u32 %s72, 1
        %s210 = smul.addr %s209, 2
        %s211 = scalar_lea.vmem [#allocation7], %s210
        %p212 = pneg %p85
        %p213 = pneg %p82
        %p214 = pneg %p111
        %p215 = pneg %p108
        %s216 = sand.u32 %s98, 1
        %s217 = scalar_lea.sflag [#allocation6], %s216
        %s218 = sand.u32 %s98, 1
        %s219 = smul.addr %s218, 2
        %s220 = scalar_lea.vmem [#allocation9], %s219
        %s221 = smul.u32 2, %s27
        %s222 = smul.u32 2, %s27
        %p223 = scmp.eq.s32.totalorder %s27, 0
        // Predicated region
        $region37: #{tpu_custom_call.1} parent=27 // pred_check
          %p224 = pneg %p223
        $region38: #{tpu_custom_call.1} parent=27 // pred_check_branch
          %226 = sbr.rel (%p224) target = $region40
        $region39: #{tpu_custom_call.1} parent=27 // pred_region
          %v227 = vlaneseq
          %vm228 = vcmp.ge.s32.totalorder %v227, 0
          %vm229 = vcmp.lt.s32.totalorder %v227, 256
          %vm230 = vmand %vm228, %vm229
          %231 = vst.msk [vmem:[#allocation2] sm:$0x3] %vm230, 0.0
          %232 = vst.msk [vmem:[#allocation3] sm:$0x3] %vm230, 0.0
        $region40: #{tpu_custom_call.1} parent=27 // pred_fallthru
          _
        %v233 = vld [vmem:[%s184] sm:$0xff]
        %v234 = vld [vmem:[%s194] sm:$0x3]
        %s235 = smul.u32 %s27, 256
        %v236 = vlaneseq
        %v237 = vand.u32 %v236, 127
        %v238 = vadd.s32 %v237, 128
        %v239 = vstv %s235
        %v240 = vadd.s32 %v239, %v237
        %v241 = vadd.s32 %v239, %v238
        %vm242 = vcmp.ne.s32.totalorder %v234, 255
        %vm243 = vcmp.lt.s32.totalorder %v240, 256
        %vm244 = vcmp.lt.s32.totalorder %v241, 256
        %v245 = vsel %vm243, 1, 0
        %v246 = vsel %vm244, 1, 0
        %v247 = vrot.slane %v246, 7
        %vm248 = vcmask 1040384
        %v249 = vsel %vm248, %v245, %v247
        %vm250 = vcmp.ne.s32.totalorder %v249, 0
        %vm251 = vmand %vm242, %vm250
        %253 = vst [vmem:[#allocation1] ss:$2 sm:$0xff] %v233
        %v254 = vld.sshfl [vmem:[#allocation1] sm:$0xff pattern:$0x75316420]
        %v255 = vld.sshfl [vmem:[#allocation1 + $0x8] sm:$0xff pattern:$0x75316420]
        %vm258 = vcmask 1043456
        %v259 = vsel %vm258, %v254, -inf
        %v260 = vrot.slane %v259, 4
        %v261 = vmax.f32 %v259, %v260
        %v262 = vrot.slane %v261, 2
        %v263 = vmax.f32 %v261, %v262
        %v264 = vrot.slane %v263, 1
        %v265 = vmax.f32 %v263, %v264
        %v266 = vsel %vm258, %v255, -inf
        %v267 = vrot.slane %v266, 4
        %v268 = vmax.f32 %v266, %v267
        %v269 = vrot.slane %v268, 2
        %v270 = vmax.f32 %v268, %v269
        %v271 = vrot.slane %v270, 1
        %v272 = vmax.f32 %v270, %v271
        %v275 = vrot.slane %v272, 4
        %v276 = vsel %vm258, %v265, %v275
        %v278 = vsub.f32 %v233, %v276
        %v279 = vmul.f32 %v278, 1.442695
        %v280 = vpow.pop %v279
        %282 = vst [vmem:[#allocation1] ss:$2 sm:$0xff] %v280
        %v283 = vld.sshfl [vmem:[#allocation1] sm:$0xff pattern:$0x75316420]
        %v284 = vld.sshfl [vmem:[#allocation1 + $0x8] sm:$0xff pattern:$0x75316420]
        %v287 = vsel %vm258, %v283, 0.0
        %v288 = vrot.slane %v287, 4
        %v289 = vadd.f32 %v287, %v288
        %v290 = vrot.slane %v289, 2
        %v291 = vadd.f32 %v289, %v290
        %v292 = vrot.slane %v291, 1
        %v293 = vadd.f32 %v291, %v292
        %v294 = vsel %vm258, %v284, 0.0
        %v295 = vrot.slane %v294, 4
        %v296 = vadd.f32 %v294, %v295
        %v297 = vrot.slane %v296, 2
        %v298 = vadd.f32 %v296, %v297
        %v299 = vrot.slane %v298, 1
        %v300 = vadd.f32 %v298, %v299
        %v301 = vlaneseq
        %v302 = vshrl.u32 %v301, 7
        %v303 = vperm.slane %v234, 0
        %v304 = vperm.slane %v234, 1
        %vm305 = vcmp.eq.s32.totalorder %v302, %v303
        %vm306 = vcmp.eq.s32.totalorder %v302, %v304
        %307 = vst [vmem:[#allocation1] ss:$2 sm:$0xff] %v280
        %v308 = vld.sshfl [vmem:[#allocation1] sm:$0xff pattern:$0x75316420]
        %v309 = vld.sshfl [vmem:[#allocation1 + $0x8] sm:$0xff pattern:$0x75316420]
        %v312 = vsel %vm305, %v308, 0.0
        %v313 = vsel %vm306, %v309, 0.0
        %v314 = vsel %vm258, %v312, 0.0
        %v315 = vrot.slane %v314, 4
        %v316 = vadd.f32 %v314, %v315
        %v317 = vrot.slane %v316, 2
        %v318 = vadd.f32 %v316, %v317
        %v319 = vrot.slane %v318, 1
        %v320 = vadd.f32 %v318, %v319
        %v321 = vsel %vm258, %v313, 0.0
        %v322 = vrot.slane %v321, 4
        %v323 = vadd.f32 %v321, %v322
        %v324 = vrot.slane %v323, 2
        %v325 = vadd.f32 %v323, %v324
        %v326 = vrot.slane %v325, 1
        %v327 = vadd.f32 %v325, %v326
        %v328 = vrcp.pop %v293
        %v329 = vrcp.pop %v300
        %v330 = vmul.f32 %v293, %v328
        %v331 = vmul.f32 %v300, %v329
        %v332 = vsub.f32 2.0, %v330
        %v333 = vsub.f32 2.0, %v331
        %v334 = vmul.f32 %v328, %v332
        %v335 = vmul.f32 %v329, %v333
        %v336 = vmul.f32 %v320, %v334
        %v337 = vmul.f32 %v327, %v335
        %v338 = vld [vmem:[#allocation2] sm:$0x3]
        %v341 = vrot.slane %v337, 7
        %v342 = vsel %vm248, %v336, %v341
        %v344 = vsel %vm251, %v342, 0.0
        %v345 = vadd.f32 %v338, %v344
        %v346 = vlaneseq
        %vm347 = vcmp.ge.s32.totalorder %v346, 0
        %vm348 = vcmp.lt.s32.totalorder %v346, 256
        %vm349 = vmand %vm347, %vm348
        %350 = vst.msk [vmem:[#allocation2] sm:$0x3] %vm349, %v345
        %v351 = vld [vmem:[#allocation3] sm:$0x3]
        %v352 = vsel %vm251, 1, 0
        %v353 = vcvt.s32.f32 %v352
        %v354 = vadd.f32 %v351, %v353
        %355 = vst.msk [vmem:[#allocation3] sm:$0x3] %vm349, %v354
        // Predicated region
        $region41: #{tpu_custom_call.1} parent=27 // pred_check
          %p356 = pneg %p223
        $region42: #{tpu_custom_call.1} parent=27 // pred_check_branch
          %358 = sbr.rel (%p356) target = $region44
        $region43: #{tpu_custom_call.1} parent=27 // pred_region
          %v359 = vld [vmem:[#allocation2] sm:$0x3]
          %v361 = vperm.slane %v359, 0
          %v362 = vperm.slane %v359, 1
          %v365 = vsel %vm248, %v361, 0.0
          %v366 = vsel %vm248, %v362, 0.0
          %v367 = vadd.f32 %v365, %v366
          %368 = vadd.xlane.f32.xlu0 %v367
          %v369 = vpop.xlane.xlu0 %368
          %v370 = vrot.slane %v369, 4
          %v371 = vadd.f32 %v369, %v370
          %v372 = vrot.slane %v371, 2
          %v373 = vadd.f32 %v371, %v372
          %v374 = vrot.slane %v373, 1
          %v375 = vadd.f32 %v373, %v374
          %s376 = vtos %v375
          %v377 = vld [vmem:[#allocation3] sm:$0x3]
          %v379 = vperm.slane %v377, 0
          %v380 = vperm.slane %v377, 1
          %v383 = vsel %vm248, %v379, 0.0
          %v384 = vsel %vm248, %v380, 0.0
          %v385 = vadd.f32 %v383, %v384
          %386 = vadd.xlane.f32.xlu0 %v385
          %v387 = vpop.xlane.xlu0 %386
          %v388 = vrot.slane %v387, 4
          %v389 = vadd.f32 %v387, %v388
          %v390 = vrot.slane %v389, 2
          %v391 = vadd.f32 %v389, %v390
          %v392 = vrot.slane %v391, 1
          %v393 = vadd.f32 %v391, %v392
          %s394 = vtos %v393
          %v395 = vstv %s376
          %396 = vst [vmem:[%s220] sm:$0x1] %v395
          %v397 = vstv %s394
          %398 = vst [vmem:[%s220 + $0x1] sm:$0x1] %v397
        $region44: #{tpu_custom_call.1} parent=27 // pred_fallthru
          _
        %s399 = sand.u32 %s98, 1
        %s400 = scalar_lea.sflag [#allocation6], %s399
        %s401 = sand.u32 %s98, 1
        %s402 = smul.addr %s401, 2
        %s403 = scalar_lea.vmem [#allocation9], %s402
        // Predicated region
        $region45: #{tpu_custom_call.1} parent=27 // pred_check
          %p404 = pneg %p108
        $region46: #{tpu_custom_call.1} parent=27 // pred_check_branch
          %406 = sbr.rel (%p404) target = $region48
        $region47: #{tpu_custom_call.1} parent=27 // pred_region
          %408 = vsyncadd %s400, 0
          %s409 = smul.addr %s26, 2
          %s410 = scalar_lea.hbm %s2, %s409
          %s412 = sshll.u32 %s403, 4
          %s413 = int_to_ptr.vmem [resolvable:$true] %s412
          %s414 = sshll.u32 %s410, 4
          %s415 = int_to_ptr.hbm [resolvable:$true] %s414
          %417 = dma.vmem_to_hbm [thread:$0]  %s413, 32, %s415, %s400
        $region48: #{tpu_custom_call.1} parent=27 // pred_fallthru
          _
      $region28: #{tpu_custom_call.1} parent=5 // pred_fallthru
        _
      %p418 = scmp.le.s32.totalorder 2, %s17
      // Predicated region
      $region49: #{tpu_custom_call.1} parent=5 // pred_check
        %p419 = pneg %p418
      $region50: #{tpu_custom_call.1} parent=5 // pred_check_branch
        %421 = sbr.rel (%p419) target = $region52
      $region51: #{tpu_custom_call.1} parent=5 // pred_region
        %s422 = ssub.s32 %s17, 2
        // Predicated region
        $region53: #{tpu_custom_call.1} parent=51 // pred_check
          %p423 = pneg %p114
        $region54: #{tpu_custom_call.1} parent=51 // pred_check_branch
          %425 = sbr.rel (%p423) target = $region56
        $region55: #{tpu_custom_call.1} parent=51 // pred_region
          %s426 = sand.u32 %s99, 1
          %s427 = scalar_lea.sflag [#allocation6], %s426
          %s428 = sand.u32 %s99, 1
          %s429 = smul.addr %s428, 2
          %s430 = scalar_lea.vmem [#allocation9], %s429
          %432 = dma.done %s427, 32
        $region56: #{tpu_custom_call.1} parent=51 // pred_fallthru
          _
      $region52: #{tpu_custom_call.1} parent=5 // pred_fallthru
        _
    $region6: #{tpu_custom_call.1} parent=1 // loop_footer
      %s21 = sadd.s32 1, %s17
    $region7: #{tpu_custom_call.1} parent=1 // loop_footer_branch
      %16 = sbr.rel target = $region3
    $region8: #{tpu_custom_call.1} parent=1 // loop_exit
      _
    %433 = vsyncpa [#allocation5], 1
    %s434 = scalar_lea.sflag [#allocation5], 1
    %435 = vsyncpa %s434, 1
    %436 = vsyncpa [#allocation8], 1
    %s437 = scalar_lea.sflag [#allocation8], 1
    %438 = vsyncpa %s437, 1
    %439 = vsyncpa [#allocation6], 1
    %s440 = scalar_lea.sflag [#allocation6], 1
    %441 = vsyncpa %s440, 1

</llo_original>
